<compile_context>
chip_gen: v7x
topology: tpu7x:2x2x1
jax: 0.10.0
libtpu: 0.0.40
codegen_flags: <defaults>
</compile_context>

<pallas_src>
import jax
import jax.numpy as jnp
from jax.experimental import pallas as pl
from jax.experimental.pallas import tpu as pltpu


def _revlocked_dropout_kernel(mask_ref, x_ref, o_ref):
    # mask_ref: (1, tn)   locked mask slice for this column block (broadcasts over rows)
    # x_ref:    (tl, tn)  row/column tile of x
    # o_ref:    (tl, tn)
    o_ref[...] = x_ref[...] * mask_ref[...]


def _tpu_generation():
    """Best-effort chip-generation detection (conservative fallback)."""
    try:
        kind = jax.devices()[0].device_kind.lower()
    except Exception:
        return "unknown"
    if "v5 lite" in kind or "v5e" in kind or "v5lite" in kind:
        return "v5e"
    if "v6" in kind or "trillium" in kind:
        return "v6e"
    if "v7" in kind or "tpu7" in kind:
        return "v7x"
    return "unknown"


# generation -> (target block bytes, scoped-VMEM limit override, split rows for 2 TCs)
_GEN_CONFIG = {
    # 4 double-buffered copies (x in + out) of an 8 MiB block = 32 MiB; raise
    # the scoped limit (default 32 MiB) to 48 MiB, still < 64 MiB physical.
    "v7x": (8 << 20, 48 << 20, True),
    # 4 x 4 MiB fits the 32 MiB default scoped VMEM with no override.
    "v6e": (4 << 20, None, False),
    # default scoped VMEM is only 16 MiB; stay near 2 MiB blocks.
    "v5e": (2 << 20, None, False),
    "unknown": (2 << 20, None, False),
}


def _sublane_multiple(dtype):
    """Packed sublane tile: 8 for 4-byte, 16 for 2-byte, 32 for 1-byte dtypes."""
    return max(8, 32 // jnp.dtype(dtype).itemsize)


def _choose_tiles(L, N, itemsize, target_block_bytes, sublane, split_rows_for_two_cores):
    """Pick (row tile tl, lane tile tn) for a [L, N] array."""
    target_elems = max(sublane * 128, target_block_bytes // itemsize)

    # Lane (last-dim) tile: keep full N unless even `sublane` rows already
    # exceed the byte target and N can be split into 128-multiples.
    tn = N
    if N % 128 == 0 and N > 128 and sublane * N > target_elems:
        tn = max(128, ((target_elems // sublane) // 128) * 128)
        tn = min(tn, N)
        while N % tn != 0:   # keep the lane tile an exact divisor of N so no
            tn -= 128        # edge column block degenerates to masked stores

    # Row (second-last-dim) tile: as many rows as fit the byte target, rounded
    # to the dtype's sublane tile (or the full axis, which is always legal).
    tl = max(1, target_elems // tn)
    if tl >= L:
        tl = L
    else:
        tl = max(sublane, (tl // sublane) * sublane)
        tl = min(tl, L)

    # v7x: a single-step grid would leave one of the two TensorCores idle.
    if (split_rows_for_two_cores
            and pl.cdiv(L, tl) * pl.cdiv(N, tn) < 2
            and L > sublane):
        half = -(-L // 2)                        # ceil(L / 2)
        half = -(-half // sublane) * sublane     # round up to a sublane multiple
        if half < L:
            tl = half

    return tl, tn


def rev_locked_dropout(x, mask, *, training=True, dropout=0.5, donate_x=False):
    """Forward of RevLockedDropout.

    x:    [L, B, D] activations.
    mask: [B, D] locked Bernoulli mask already scaled by 1/(1-p) (see set_mask).

    `dropout` mirrors the (unused) kwarg of the PyTorch forward; in training
    mode the mask is always applied, exactly like the module.  Pass
    donate_x=True only when the caller never reads x afterwards: the output
    then reuses x's HBM buffer (halves peak footprint, same bandwidth).
    """
    del dropout  # unused in the PyTorch forward as well
    if not training:
        return x  # identity path: skip the pointless HBM round-trip

    L, B, D = x.shape
    assert mask.shape == (B, D)
    N = B * D

    # Lane-dense 2-D views; cast the mask once outside the kernel.
    x2 = x.reshape(L, N)
    m2 = mask.astype(x.dtype).reshape(1, N)
    # TODO(synk): if exact fp32-mask-multiply-then-downcast numerics are needed
    # for low-precision x, keep the mask in fp32 and cast inside the kernel.

    gen = _tpu_generation()
    target_bytes, vmem_limit, split_rows = _GEN_CONFIG.get(gen, _GEN_CONFIG["unknown"])
    sublane = _sublane_multiple(x.dtype)
    itemsize = jnp.dtype(x.dtype).itemsize

    tl, tn = _choose_tiles(L, N, itemsize, target_bytes, sublane, split_rows)
    grid = (pl.cdiv(L, tl), pl.cdiv(N, tn))

    compiler_kwargs = dict(dimension_semantics=("parallel", "parallel"))
    if vmem_limit is not None:
        compiler_kwargs["vmem_limit_bytes"] = vmem_limit

    out2 = pl.pallas_call(
        _revlocked_dropout_kernel,
        out_shape=jax.ShapeDtypeStruct((L, N), x.dtype),
        grid_spec=pltpu.PrefetchScalarGridSpec(
            num_scalar_prefetch=0,
            grid=grid,
            in_specs=[
                # mask: (1, tn) slice for this column block; constant row index
                # keeps it resident across the whole row axis.
                pl.BlockSpec((1, tn), lambda l, n: (0, n)),
                # x: (tl, tn) tile per grid step.
                pl.BlockSpec((tl, tn), lambda l, n: (l, n)),
            ],
            out_specs=pl.BlockSpec((tl, tn), lambda l, n: (l, n)),
        ),
        compiler_params=pltpu.CompilerParams(**compiler_kwargs),
        input_output_aliases=({1: 0} if donate_x else {}),
    )(m2, x2)

    return out2.reshape(L, B, D)


def set_mask(key, batch_size, dim, dropout, dtype=jnp.float32):
    """Mirror of RevLockedDropout.set_mask: Bernoulli(1-p) mask / (1-p)."""
    keep = jax.random.bernoulli(key, 1.0 - dropout, (batch_size, dim))
    return keep.astype(dtype) / (1.0 - dropout)


if __name__ == "__main__":
    dropout_p = 0.5
    key = jax.random.PRNGKey(0)

    # Small shapes consistent with the module's forward: seq=8, batch=2, dim=32.
    L, B, D = 8, 2, 32
    key, km, kx = jax.random.split(key, 3)
    mask = set_mask(km, B, D, dropout_p)                    # [B, D]
    x = jax.random.normal(kx, (L, B, D), jnp.float32)       # [L, B, D]

    out = rev_locked_dropout(x, mask, training=True, dropout=dropout_p)
    out = jax.block_until_ready(out)
    ref = mask[None, :, :].astype(x.dtype) * x
    assert out.shape == x.shape and out.dtype == x.dtype
    assert jnp.allclose(out, ref, atol=1e-6, rtol=1e-6)

    # Lane-dense path (D a multiple of 128 -> unmasked 128-wide stores).
    L2, B2, D2 = 16, 2, 128
    key, km2, kx2 = jax.random.split(key, 3)
    mask2 = set_mask(km2, B2, D2, dropout_p)
    x_big = jax.random.normal(kx2, (L2, B2, D2), jnp.float32)
    out2 = jax.block_until_ready(
        rev_locked_dropout(x_big, mask2, training=True, dropout=dropout_p))
    ref2 = mask2[None, :, :] * x_big
    assert jnp.allclose(out2, ref2, atol=1e-6, rtol=1e-6)

    # Eval-mode path is identity.
    out_eval = jax.block_until_ready(
        rev_locked_dropout(x, mask, training=False, dropout=dropout_p))
    assert jnp.array_equal(out_eval, x)

    print("KERNEL_OK")
</pallas_src>

<mosaic_0001>
module attributes {stable_mosaic.version = 11 : i64} {
  func.func @_revlocked_dropout_kernel(%arg0: i32, %arg1: i32, %arg2: memref<1x64xf32, #tpu.memory_space<vmem>>, %arg3: memref<8x64xf32, #tpu.memory_space<vmem>>, %arg4: memref<8x64xf32, #tpu.memory_space<vmem>>) attributes {dimension_semantics = [#tpu.dimension_semantics<parallel>, #tpu.dimension_semantics<parallel>], iteration_bounds = array<i64: 1, 1>, scalar_prefetch = 0 : i64, scratch_operands = 0 : i64, tpu.core_type = #tpu.core_type<tc>, window_params = [{transform_indices = @transform_0, window_bounds = array<i64: 1, 64>}, {transform_indices = @transform_1, window_bounds = array<i64: 8, 64>}, {transform_indices = @transform_2, window_bounds = array<i64: 8, 64>}]} {
    %c0 = arith.constant 0 : index
    %c0_0 = arith.constant 0 : index
    %0 = vector.load %arg3[%c0, %c0_0] : memref<8x64xf32, #tpu.memory_space<vmem>>, vector<8x64xf32>
    %c0_1 = arith.constant 0 : index
    %c0_2 = arith.constant 0 : index
    %1 = vector.load %arg2[%c0_1, %c0_2] : memref<1x64xf32, #tpu.memory_space<vmem>>, vector<1x64xf32>
    %2 = vector.broadcast %1 : vector<1x64xf32> to vector<8x64xf32>
    %3 = arith.mulf %0, %2 : vector<8x64xf32>
    %c0_3 = arith.constant 0 : index
    %c0_4 = arith.constant 0 : index
    %4 = vector.load %arg4[%c0_3, %c0_4] : memref<8x64xf32, #tpu.memory_space<vmem>>, vector<8x64xf32>
    tpu.vector_store %arg4[%c0_3, %c0_4], %3 {strides = array<i32>} : memref<8x64xf32, #tpu.memory_space<vmem>>, vector<8x64xf32>,
    return
  }
  func.func @transform_0(%arg0: i32, %arg1: i32) -> (i32, i32) {
    %c0_i32 = arith.constant 0 : i32
    %c0_i32_0 = arith.constant 0 : i32
    return %c0_i32, %arg1 : i32, i32
  }
  func.func @transform_1(%arg0: i32, %arg1: i32) -> (i32, i32) {
    %c0_i32 = arith.constant 0 : i32
    return %arg0, %arg1 : i32, i32
  }
  func.func @transform_2(%arg0: i32, %arg1: i32) -> (i32, i32) {
    %c0_i32 = arith.constant 0 : i32
    return %arg0, %arg1 : i32, i32
  }
}

</mosaic_0001>

<llo_original>
// kernel: tpu_custom_call.1
$region0: #{tpu_custom_call.1}
  #allocation0 [shape = 'u32[]', space=smem, size = 0x4, offset = 0x4, fixed_abs, tag = 'smem constant byte address 0x4 - core index']
  #allocation1 [shape = 'u32[144,128]{1,0:T(1,128)}', space=vmem, size = 0x12000, scoped, tag = 'internal scratch']
  %s0 = inlined_call_operand.hbm [shape: f32[1,64], index: 0, kind: input, shape index: {}]
  %s1 = inlined_call_operand.hbm [shape: f32[8,64], index: 1, kind: input, shape index: {}]
  %s2 = inlined_call_operand.hbm [shape: f32[8,64], index: 2, kind: output, shape index: {}]
  %s3 = sld [smem:[#allocation0]]
  $region26: #{tpu_custom_call.1} parent=0
    _
  %s5 = ssub.s32 1, %s3
  %s6 = scalar_select 0, %s5, %s3
  $region1: #{tpu_custom_call.1} parent=0
    #allocation2 [shape = 'u8[512]{0}', space=vmem, size = 0x400, scoped, tag = 'input window, operand 0, single buffered']
    #allocation3 [shape = 's32[1]{0}', space=sflag, size = 0x4, scoped, tag = 'scoped memory for tpu_custom_call.1']
    #allocation4 [shape = 's32[1]{0}', space=sflag, size = 0x4, scoped, tag = 'scoped memory for tpu_custom_call.1']
    #allocation5 [shape = 'u8[4096]{0}', space=vmem, size = 0x1000, scoped, tag = 'input window, operand 1, single buffered']
    #allocation6 [shape = 's32[1]{0}', space=sflag, size = 0x4, scoped, tag = 'scoped memory for tpu_custom_call.1']
    #allocation7 [shape = 'u8[4096]{0}', space=vmem, size = 0x1000, scoped, tag = 'output window, operand 0, single buffered']
    %7 = vsyncpa [#allocation3], 0
    %8 = vsyncpa [#allocation6], 0
    %9 = vsyncpa [#allocation4], 0
    // Predicated region
    $region2: #{tpu_custom_call.1} parent=1 // pred_check
      _
    $region3: #{tpu_custom_call.1} parent=1 // pred_check_branch
      %11 = sbr.rel (0) target = $region5
    $region4: #{tpu_custom_call.1} parent=1 // pred_region
      %s13 = ssub.s32 16, 16
      %14 = vsyncadd [#allocation3], %s13
      %s16 = sshll.u32 [#allocation2], 4
      %s17 = int_to_ptr.vmem [resolvable:$true] %s16
      %19 = dma.hbm_to_vmem [thread:$0]  %s0, 16, %s17, [#allocation3]
    $region5: #{tpu_custom_call.1} parent=1 // pred_fallthru
      _
    // Predicated region
    $region6: #{tpu_custom_call.1} parent=1 // pred_check
      _
    $region7: #{tpu_custom_call.1} parent=1 // pred_check_branch
      %21 = sbr.rel (0) target = $region9
    $region8: #{tpu_custom_call.1} parent=1 // pred_region
      %s23 = ssub.s32 128, 128
      %24 = vsyncadd [#allocation6], %s23
      %s26 = sshll.u32 [#allocation5], 4
      %s27 = int_to_ptr.vmem [resolvable:$true] %s26
      %29 = dma.hbm_to_vmem [thread:$0]  %s1, 128, %s27, [#allocation6]
    $region9: #{tpu_custom_call.1} parent=1 // pred_fallthru
      _
    // Predicated region
    $region10: #{tpu_custom_call.1} parent=1 // pred_check
      _
    $region11: #{tpu_custom_call.1} parent=1 // pred_check_branch
      %31 = sbr.rel (0) target = $region13
    $region12: #{tpu_custom_call.1} parent=1 // pred_region
      %32 = dma.done [#allocation3], 16
    $region13: #{tpu_custom_call.1} parent=1 // pred_fallthru
      _
    // Predicated region
    $region14: #{tpu_custom_call.1} parent=1 // pred_check
      _
    $region15: #{tpu_custom_call.1} parent=1 // pred_check_branch
      %34 = sbr.rel (0) target = $region17
    $region16: #{tpu_custom_call.1} parent=1 // pred_region
      %35 = dma.done [#allocation6], 128
    $region17: #{tpu_custom_call.1} parent=1 // pred_fallthru
      _
    %v36 = vld [vmem:[#allocation5] sm:$0xff]
    %v37 = vld [vmem:[#allocation2] sm:$0x1]
    %v39 = vlaneseq
    %v40 = vshrl.u32 %v39, 7
    %v41 = vsub.s32 0, %v40
    %v42 = vrot.slane %v37, %v41
    %v44 = vmul.f32 %v36, %v42
    %vm45 = vcmask 523264
    %46 = vst.msk [vmem:[#allocation7] sm:$0xff] %vm45, %v44
    // Predicated region
    $region18: #{tpu_custom_call.1} parent=1 // pred_check
      _
    $region19: #{tpu_custom_call.1} parent=1 // pred_check_branch
      %48 = sbr.rel (0) target = $region21
    $region20: #{tpu_custom_call.1} parent=1 // pred_region
      %s50 = ssub.s32 128, 128
      %51 = vsyncadd [#allocation4], %s50
      %s53 = sshll.u32 [#allocation7], 4
      %s54 = int_to_ptr.vmem [resolvable:$true] %s53
      %56 = dma.vmem_to_hbm [thread:$0]  %s54, 128, %s2, [#allocation4]
    $region21: #{tpu_custom_call.1} parent=1 // pred_fallthru
      _
    // Predicated region
    $region22: #{tpu_custom_call.1} parent=1 // pred_check
      _
    $region23: #{tpu_custom_call.1} parent=1 // pred_check_branch
      %58 = sbr.rel (0) target = $region25
    $region24: #{tpu_custom_call.1} parent=1 // pred_region
      %59 = dma.done [#allocation4], 128
    $region25: #{tpu_custom_call.1} parent=1 // pred_fallthru
      _
    %60 = vsyncpa [#allocation3], 1
    %61 = vsyncpa [#allocation6], 1
    %62 = vsyncpa [#allocation4], 1

</llo_original>
